<compile_context>
chip_gen: v7x
topology: tpu7x:2x2x1
jax: 0.10.0
libtpu: 0.0.40
codegen_flags: <defaults>
</compile_context>

<pallas_src>
import jax
import jax.numpy as jnp
from jax import lax
from jax.experimental import pallas as pl
from jax.experimental.pallas import tpu as pltpu

_EPS = 1e-8  # nn.CosineSimilarity default eps


def _round_up(x, m):
    return ((x + m - 1) // m) * m


def _cdiv(a, b):
    return -(-a // b)


def _vmem_capacity_bytes():
    try:
        cap = getattr(pltpu.get_tpu_info(), "vmem_capacity_bytes", None)
        if cap:
            return int(cap)
    except Exception:
        pass
    return 64 << 20  # conservative fallback: v7x per-TensorCore VMEM


def _scorer_kernel(text_ref, labeln_ref, out_ref):
    # text_ref:   (TN, Dp)  raw text tile, native dtype (bf16 stays bf16 into the MXU)
    # labeln_ref: (TL, Dp)  PRE-NORMALIZED label tile (normalized once in the wrapper)
    # out_ref:    (TN, TL)  f32 cosine tile (lane-dense: TL % 128 == 0)
    t = text_ref[...]

    # Text row norm in f32 (v5e VPU/EUP have no bf16 path); rsqrt goes to the EUP slot.
    t32 = t.astype(jnp.float32)
    inv_t = lax.rsqrt(jnp.maximum(jnp.sum(t32 * t32, axis=1, keepdims=True),
                                  _EPS * _EPS))                       # (TN, 1)

    # Single MXU matmul on the un-scaled text tile against pre-normalized labels.
    dots = lax.dot_general(
        t, labeln_ref[...],
        dimension_numbers=(((1,), (1,)), ((), ())),
        preferred_element_type=jnp.float32,
    )                                                                  # (TN, TL)

    # Epilogue: one VPU pass over (TN, TL) -- row scale broadcast along lanes.
    out_ref[...] = (dots * inv_t).astype(out_ref.dtype)


def scorer(text_encodings, label_encodings, *, tile_n=None, tile_l=None):
    """Pallas equivalent of Scorer.forward.

    text_encodings:  [N, D]
    label_encodings: [L, D]
    returns:         [N, L] float32 cosine-similarity matrix
    """
    N, D = text_encodings.shape
    L, D2 = label_encodings.shape
    assert D == D2, "feature dims must match"

    in_dtype = text_encodings.dtype
    itemsize = jnp.dtype(in_dtype).itemsize
    sub = {4: 8, 2: 16, 1: 32}.get(itemsize, 8)   # sublane multiple for this dtype

    # --- Label normalization hoisted out of the kernel (runs once, in XLA) ----
    lab32 = label_encodings.astype(jnp.float32)
    inv_l = lax.rsqrt(jnp.maximum(jnp.sum(lab32 * lab32, axis=1, keepdims=True),
                                  _EPS * _EPS))
    lab_n = (lab32 * inv_l).astype(in_dtype)

    Dp = _round_up(D, 128)                        # lane-dense MXU contraction dim

    # --- VMEM-budgeted tile sizes ---------------------------------------------
    vmem_cap = _vmem_capacity_bytes()
    budget = (vmem_cap * 3) // 4                  # pipeline-buffer budget w/ headroom

    Lp128 = _round_up(L, 128)
    if tile_l is None:
        tl_cap = ((budget // 4) // (2 * Dp * itemsize)) // 128 * 128
        TL = min(Lp128, max(128, tl_cap))         # resident if it fits, else L-tiled
    else:
        TL = min(_round_up(tile_l, 128), Lp128)
    Lp = _round_up(L, TL)
    l_steps = Lp // TL

    label_bytes = 2 * TL * Dp * itemsize                              # dbl-buffered label tile
    per_row = 2 * Dp * itemsize + 2 * TL * 4 + Dp * 4 + TL * 4        # text dbl-buf + out dbl-buf + f32 temps
    if tile_n is None:
        tn_cap = (budget - label_bytes) // per_row
        tn_cap = min(2048, max(sub, (tn_cap // sub) * sub))
    else:
        tn_cap = max(sub, _round_up(tile_n, sub))

    if N <= tn_cap:
        n_steps = 1
        TN = _round_up(N, sub)
    else:
        n_steps = _cdiv(N, tn_cap)
        TN = _round_up(_cdiv(N, n_steps), sub)    # near-equal tiles, minimal padding
    Np = TN * n_steps

    # --- Pad only the axes that need it (no HBM copy in the aligned case) -----
    t_p = text_encodings
    if (Np, Dp) != (N, D):
        t_p = jnp.pad(t_p, ((0, Np - N), (0, Dp - D)))
    l_p = lab_n
    if (Lp, Dp) != (L, D):
        l_p = jnp.pad(l_p, ((0, Lp - L), (0, Dp - D)))

    grid = (n_steps, l_steps)   # label axis innermost -> text tile stays resident across it

    cost = pl.CostEstimate(
        flops=2 * Np * Lp * Dp,
        transcendentals=Np * l_steps,
        bytes_accessed=Np * Dp * itemsize + Lp * Dp * itemsize + Np * Lp * 4,
    )

    out = pl.pallas_call(
        _scorer_kernel,
        out_shape=jax.ShapeDtypeStruct((Np, Lp), jnp.float32),
        grid_spec=pltpu.PrefetchScalarGridSpec(
            num_scalar_prefetch=0,
            grid=grid,
            in_specs=[
                pl.BlockSpec((TN, Dp), lambda i, j: (i, 0)),   # text: tiled over N
                pl.BlockSpec((TL, Dp), lambda i, j: (j, 0)),   # labels: tiled over L (resident if l_steps==1)
            ],
            out_specs=pl.BlockSpec((TN, TL), lambda i, j: (i, j)),
        ),
        compiler_params=pltpu.CompilerParams(
            dimension_semantics=("parallel", "parallel"),      # megacore-safe: no reduction axis
            vmem_limit_bytes=(vmem_cap * 7) // 8,              # v5e scoped default is only 16 MiB
        ),
        cost_estimate=cost,
    )(t_p, l_p)

    return out[:N, :L]


def _reference(text_encodings, label_encodings):
    # Pure-JAX reference matching torch.nn.CosineSimilarity semantics.
    t = text_encodings.astype(jnp.float32)
    lab = label_encodings.astype(jnp.float32)
    dots = t @ lab.T
    tn = jnp.linalg.norm(t, axis=1, keepdims=True)
    ln = jnp.linalg.norm(lab, axis=1, keepdims=True)
    return dots / jnp.maximum(tn * ln.T, _EPS)


if __name__ == "__main__":
    key = jax.random.PRNGKey(0)
    k_text, k_label, k2t, k2l = jax.random.split(key, 4)

    # Case 1: small shapes consistent with the module (N texts, L labels, hidden D).
    N, L, D = 8, 4, 32
    text_encodings = jax.random.normal(k_text, (N, D), dtype=jnp.float32)
    label_encodings = jax.random.normal(k_label, (L, D), dtype=jnp.float32)

    out = jax.block_until_ready(scorer(text_encodings, label_encodings))
    ref = _reference(text_encodings, label_encodings)
    assert out.shape == (N, L)
    assert jnp.allclose(out, ref, atol=1e-5, rtol=1e-5), "mismatch vs reference (case 1)"

    # Case 2: exercises the N-grid, the L-grid, and the padding paths.
    N2, L2, D2 = 300, 200, 96
    text2 = jax.random.normal(k2t, (N2, D2), dtype=jnp.float32)
    label2 = jax.random.normal(k2l, (L2, D2), dtype=jnp.float32)
    out2 = jax.block_until_ready(scorer(text2, label2, tile_n=128, tile_l=128))
    ref2 = _reference(text2, label2)
    assert out2.shape == (N2, L2)
    assert jnp.allclose(out2, ref2, atol=1e-5, rtol=1e-5), "mismatch vs reference (case 2)"

    print("KERNEL_OK")
</pallas_src>

<mosaic_0001>
module attributes {stable_mosaic.version = 11 : i64} {
  func.func @_scorer_kernel(%arg0: i32, %arg1: i32, %arg2: memref<8x128xf32, #tpu.memory_space<vmem>>, %arg3: memref<128x128xf32, #tpu.memory_space<vmem>>, %arg4: memref<8x128xf32, #tpu.memory_space<vmem>>) attributes {dimension_semantics = [#tpu.dimension_semantics<parallel>, #tpu.dimension_semantics<parallel>], iteration_bounds = array<i64: 1, 1>, scalar_prefetch = 0 : i64, scratch_operands = 0 : i64, tpu.core_type = #tpu.core_type<tc>, window_params = [{transform_indices = @transform_0, window_bounds = array<i64: 8, 128>}, {transform_indices = @transform_1, window_bounds = array<i64: 128, 128>}, {transform_indices = @transform_2, window_bounds = array<i64: 8, 128>}]} {
    %c0 = arith.constant 0 : index
    %c0_0 = arith.constant 0 : index
    %0 = vector.load %arg2[%c0, %c0_0] : memref<8x128xf32, #tpu.memory_space<vmem>>, vector<8x128xf32>
    %1 = arith.mulf %0, %0 : vector<8x128xf32>
    %cst = arith.constant dense<0.000000e+00> : vector<8xf32>
    %2 = vector.multi_reduction <add>, %1, %cst [1] : vector<8x128xf32> to vector<8xf32>
    %3 = vector.shape_cast %2 : vector<8xf32> to vector<8x1xf32>
    %cst_1 = arith.constant 1.000000e-16 : f32
    %4 = vector.broadcast %cst_1 : f32 to vector<8x1xf32>
    %5 = arith.maximumf %3, %4 : vector<8x1xf32>
    %6 = math.rsqrt %5 : vector<8x1xf32>
    %c0_2 = arith.constant 0 : index
    %c0_3 = arith.constant 0 : index
    %7 = vector.load %arg3[%c0_2, %c0_3] : memref<128x128xf32, #tpu.memory_space<vmem>>, vector<128x128xf32>
    %cst_4 = arith.constant dense<0.000000e+00> : vector<8x128xf32>
    %8 = tpu.matmul %0, %7, %cst_4 {dimension_numbers = #tpu.dot_dimension_numbers<[1], [1], [0], [0], [0, 0, 1, 0], [], []>} : vector<8x128xf32>, vector<128x128xf32>, vector<8x128xf32> -> vector<8x128xf32>
    %9 = vector.broadcast %6 : vector<8x1xf32> to vector<8x128xf32>
    %10 = arith.mulf %8, %9 : vector<8x128xf32>
    %c0_5 = arith.constant 0 : index
    %c0_6 = arith.constant 0 : index
    %11 = vector.load %arg4[%c0_5, %c0_6] : memref<8x128xf32, #tpu.memory_space<vmem>>, vector<8x128xf32>
    tpu.vector_store %arg4[%c0_5, %c0_6], %10 {strides = array<i32>} : memref<8x128xf32, #tpu.memory_space<vmem>>, vector<8x128xf32>,
    return
  }
  func.func @transform_0(%arg0: i32, %arg1: i32) -> (i32, i32) {
    %c0_i32 = arith.constant 0 : i32
    %c0_i32_0 = arith.constant 0 : i32
    return %arg0, %c0_i32 : i32, i32
  }
  func.func @transform_1(%arg0: i32, %arg1: i32) -> (i32, i32) {
    %c0_i32 = arith.constant 0 : i32
    %c0_i32_0 = arith.constant 0 : i32
    return %arg1, %c0_i32 : i32, i32
  }
  func.func @transform_2(%arg0: i32, %arg1: i32) -> (i32, i32) {
    %c0_i32 = arith.constant 0 : i32
    return %arg0, %arg1 : i32, i32
  }
}

</mosaic_0001>

<llo_original>
// kernel: tpu_custom_call.1
$region0: #{tpu_custom_call.1}
  #allocation0 [shape = 'u32[]', space=smem, size = 0x4, offset = 0x4, fixed_abs, tag = 'smem constant byte address 0x4 - core index']
  #allocation1 [shape = 'u32[144,128]{1,0:T(1,128)}', space=vmem, size = 0x12000, scoped, tag = 'internal scratch']
  %s0 = inlined_call_operand.hbm [shape: f32[8,128], index: 0, kind: input, shape index: {}]
  %s1 = inlined_call_operand.hbm [shape: f32[128,128], index: 1, kind: input, shape index: {}]
  %s2 = inlined_call_operand.hbm [shape: f32[8,128], index: 2, kind: output, shape index: {}]
  %s3 = sld [smem:[#allocation0]]
  $region26: #{tpu_custom_call.1} parent=0
    _
  %s5 = ssub.s32 1, %s3
  %s6 = scalar_select 0, %s5, %s3
  $region1: #{tpu_custom_call.1} parent=0
    #allocation2 [shape = 'u8[4096]{0}', space=vmem, size = 0x1000, scoped, tag = 'input window, operand 0, single buffered']
    #allocation3 [shape = 's32[1]{0}', space=sflag, size = 0x4, scoped, tag = 'scoped memory for tpu_custom_call.1']
    #allocation4 [shape = 's32[1]{0}', space=sflag, size = 0x4, scoped, tag = 'scoped memory for tpu_custom_call.1']
    #allocation5 [shape = 'u8[65536]{0}', space=vmem, size = 0x10000, scoped, tag = 'input window, operand 1, single buffered']
    #allocation6 [shape = 's32[1]{0}', space=sflag, size = 0x4, scoped, tag = 'scoped memory for tpu_custom_call.1']
    #allocation7 [shape = 'u8[4096]{0}', space=vmem, size = 0x1000, scoped, tag = 'output window, operand 0, single buffered']
    %7 = vsyncpa [#allocation3], 0
    %8 = vsyncpa [#allocation6], 0
    %9 = vsyncpa [#allocation4], 0
    // Predicated region
    $region2: #{tpu_custom_call.1} parent=1 // pred_check
      _
    $region3: #{tpu_custom_call.1} parent=1 // pred_check_branch
      %11 = sbr.rel (0) target = $region5
    $region4: #{tpu_custom_call.1} parent=1 // pred_region
      %s13 = ssub.s32 128, 128
      %14 = vsyncadd [#allocation3], %s13
      %s16 = sshll.u32 [#allocation2], 4
      %s17 = int_to_ptr.vmem [resolvable:$true] %s16
      %19 = dma.hbm_to_vmem [thread:$0]  %s0, 128, %s17, [#allocation3]
    $region5: #{tpu_custom_call.1} parent=1 // pred_fallthru
      _
    // Predicated region
    $region6: #{tpu_custom_call.1} parent=1 // pred_check
      _
    $region7: #{tpu_custom_call.1} parent=1 // pred_check_branch
      %21 = sbr.rel (0) target = $region9
    $region8: #{tpu_custom_call.1} parent=1 // pred_region
      %s23 = ssub.s32 2048, 2048
      %24 = vsyncadd [#allocation6], %s23
      %s25 = sshll.u32 [#allocation5], 4
      %s26 = int_to_ptr.vmem [resolvable:$true] %s25
      %31 = dma.hbm_to_vmem [thread:$0]  %s1, 2048, %s26, [#allocation6], 128, 128, 8
    $region9: #{tpu_custom_call.1} parent=1 // pred_fallthru
      _
    // Predicated region
    $region10: #{tpu_custom_call.1} parent=1 // pred_check
      _
    $region11: #{tpu_custom_call.1} parent=1 // pred_check_branch
      %33 = sbr.rel (0) target = $region13
    $region12: #{tpu_custom_call.1} parent=1 // pred_region
      %34 = dma.done [#allocation3], 128
    $region13: #{tpu_custom_call.1} parent=1 // pred_fallthru
      _
    // Predicated region
    $region14: #{tpu_custom_call.1} parent=1 // pred_check
      _
    $region15: #{tpu_custom_call.1} parent=1 // pred_check_branch
      %36 = sbr.rel (0) target = $region17
    $region16: #{tpu_custom_call.1} parent=1 // pred_region
      %37 = dma.done [#allocation6], 2048
    $region17: #{tpu_custom_call.1} parent=1 // pred_fallthru
      _
    %v38 = vld [vmem:[#allocation2] sm:$0xff]
    %v39 = vmul.f32 %v38, %v38
    %40 = vadd.xlane.f32.xlu0 %v39
    %v41 = vpop.xlane.xlu0 %40
    %v42 = vmax.f32 %v41, 1e-16
    %v43 = vrsqrt.pop %v42
    %v44 = vld [vmem:[#allocation5] sm:$0xff]
    %v45 = vld [vmem:[#allocation5 + $0x8] sm:$0xff]
    %v46 = vld [vmem:[#allocation5 + $0x10] sm:$0xff]
    %v47 = vld [vmem:[#allocation5 + $0x18] sm:$0xff]
    %v48 = vld [vmem:[#allocation5 + $0x20] sm:$0xff]
    %v49 = vld [vmem:[#allocation5 + $0x28] sm:$0xff]
    %v50 = vld [vmem:[#allocation5 + $0x30] sm:$0xff]
    %v51 = vld [vmem:[#allocation5 + $0x38] sm:$0xff]
    %v52 = vld [vmem:[#allocation5 + $0x40] sm:$0xff]
    %v53 = vld [vmem:[#allocation5 + $0x48] sm:$0xff]
    %v54 = vld [vmem:[#allocation5 + $0x50] sm:$0xff]
    %v55 = vld [vmem:[#allocation5 + $0x58] sm:$0xff]
    %v56 = vld [vmem:[#allocation5 + $0x60] sm:$0xff]
    %v57 = vld [vmem:[#allocation5 + $0x68] sm:$0xff]
    %v58 = vld [vmem:[#allocation5 + $0x70] sm:$0xff]
    %v59 = vld [vmem:[#allocation5 + $0x78] sm:$0xff]
    %60 = vmatprep.subr.mxu0 0.0
    %61 = vmatpush1.xpose.msra.mxu0 %v44
    %62 = vmatprep.subr.mxu0 0.0
    %63 = vmatpush1.xpose.msra.mxu0 %v45
    %64 = vmatprep.subr.mxu0 0.0
    %65 = vmatpush1.xpose.msra.mxu0 %v46
    %66 = vmatprep.subr.mxu0 0.0
    %67 = vmatpush1.xpose.msra.mxu0 %v47
    %68 = vmatprep.subr.mxu0 0.0
    %69 = vmatpush1.xpose.msra.mxu0 %v48
    %70 = vmatprep.subr.mxu0 0.0
    %71 = vmatpush1.xpose.msra.mxu0 %v49
    %72 = vmatprep.subr.mxu0 0.0
    %73 = vmatpush1.xpose.msra.mxu0 %v50
    %74 = vmatprep.subr.mxu0 0.0
    %75 = vmatpush1.xpose.msra.mxu0 %v51
    %76 = vmatprep.subr.mxu0 0.0
    %77 = vmatpush1.xpose.msra.mxu0 %v52
    %78 = vmatprep.subr.mxu0 0.0
    %79 = vmatpush1.xpose.msra.mxu0 %v53
    %80 = vmatprep.subr.mxu0 0.0
    %81 = vmatpush1.xpose.msra.mxu0 %v54
    %82 = vmatprep.subr.mxu0 0.0
    %83 = vmatpush1.xpose.msra.mxu0 %v55
    %84 = vmatprep.subr.mxu0 0.0
    %85 = vmatpush1.xpose.msra.mxu0 %v56
    %86 = vmatprep.subr.mxu0 0.0
    %87 = vmatpush1.xpose.msra.mxu0 %v57
    %88 = vmatprep.subr.mxu0 0.0
    %89 = vmatpush1.xpose.msra.mxu0 %v58
    %90 = vmatprep.subr.mxu0 0.0
    %91 = vmatpush1.xpose.msra.mxu0 %v59
    %92 = vmatprep.subr.mxu0 0.0
    %93 = vmatpush1.xpose.msra.mxu0 0.0
    %94 = vmatprep.subr.mxu0 0.0
    %95 = vmatpush1.xpose.msra.mxu0 0.0
    %96 = vmatprep.subr.mxu0 0.0
    %97 = vmatpush1.xpose.msra.mxu0 0.0
    %98 = vmatprep.subr.mxu0 0.0
    %99 = vmatpush1.xpose.msra.mxu0 0.0
    %100 = vmatprep.subr.mxu0 0.0
    %101 = vmatpush1.xpose.msra.mxu0 0.0
    %102 = vmatprep.subr.mxu0 0.0
    %103 = vmatpush1.xpose.msra.mxu0 0.0
    %104 = vmatprep.subr.mxu0 0.0
    %105 = vmatpush1.xpose.msra.mxu0 0.0
    %106 = vmatprep.subr.mxu0 0.0
    %107 = vmatpush1.xpose.msra.mxu0 0.0
    %108 = vmatprep.subr.mxu0 0.0
    %109 = vmatpush1.xpose.msra.mxu0 0.0
    %110 = vmatprep.subr.mxu0 0.0
    %111 = vmatpush1.xpose.msra.mxu0 0.0
    %112 = vmatprep.subr.mxu0 0.0
    %113 = vmatpush1.xpose.msra.mxu0 0.0
    %114 = vmatprep.subr.mxu0 0.0
    %115 = vmatpush1.xpose.msra.mxu0 0.0
    %116 = vmatprep.subr.mxu0 0.0
    %117 = vmatpush1.xpose.msra.mxu0 0.0
    %118 = vmatprep.subr.mxu0 0.0
    %119 = vmatpush1.xpose.msra.mxu0 0.0
    %120 = vmatprep.subr.mxu0 0.0
    %121 = vmatpush1.xpose.msra.mxu0 0.0
    %122 = vmatprep.subr.mxu0 0.0
    %123 = vmatpush1.xpose.msra.mxu0 0.0
    %124 = vmatprep.mubr.f32.mxu0 0.0
    %125 = vmatmul.mubr.f32.gmra.mrb[0].mxu0 %v38
    %v126 = vpop.f32.mrb[0].mxu0
    %v127 = vadd.f32 0.0, %v126
    %v128 = vpop.f32.mrb[0].mxu0
    %129 = vdwg.mxu0
    %v130 = vmul.f32 %v127, %v43
    %131 = vst [vmem:[#allocation7] sm:$0xff] %v130
    // Predicated region
    $region18: #{tpu_custom_call.1} parent=1 // pred_check
      _
    $region19: #{tpu_custom_call.1} parent=1 // pred_check_branch
      %133 = sbr.rel (0) target = $region21
    $region20: #{tpu_custom_call.1} parent=1 // pred_region
      %s135 = ssub.s32 128, 128
      %136 = vsyncadd [#allocation4], %s135
      %s138 = sshll.u32 [#allocation7], 4
      %s139 = int_to_ptr.vmem [resolvable:$true] %s138
      %141 = dma.vmem_to_hbm [thread:$0]  %s139, 128, %s2, [#allocation4]
    $region21: #{tpu_custom_call.1} parent=1 // pred_fallthru
      _
    // Predicated region
    $region22: #{tpu_custom_call.1} parent=1 // pred_check
      _
    $region23: #{tpu_custom_call.1} parent=1 // pred_check_branch
      %143 = sbr.rel (0) target = $region25
    $region24: #{tpu_custom_call.1} parent=1 // pred_region
      %144 = dma.done [#allocation4], 128
    $region25: #{tpu_custom_call.1} parent=1 // pred_fallthru
      _
    %145 = vsyncpa [#allocation3], 1
    %146 = vsyncpa [#allocation6], 1
    %147 = vsyncpa [#allocation4], 1

</llo_original>
